<compile_context>
chip_gen: v6e
topology: v6e:2x2x1
jax: 0.10.0
libtpu: 0.0.40
codegen_flags: <defaults>
</compile_context>

<pallas_src>
import functools

import jax
import jax.numpy as jnp
from jax import lax
from jax.experimental import pallas as pl
from jax.experimental.pallas import tpu as pltpu


def _glove_kernel(tb,
                  c_idx_ref, o_idx_ref,          # SMEM scalar-prefetch: (B_pad,) int32
                  c_hbm, o_hbm,                  # HBM (pl.ANY): (V, E_pad) augmented tables
                  coocs_ref, w_ref,              # VMEM: (tb, 1) per-tile
                  out_ref,                       # VMEM: (1, 8, 128) per-split partial sum
                  c_buf, o_buf,                  # VMEM scratch: (2, tb, E_pad) double buffers
                  c_sem, o_sem):                 # DMA semaphores: (2,) each (one per slot)
    s = pl.program_id(0)            # batch split (megacore-parallel axis)
    i = pl.program_id(1)            # tile within the split (reduction axis)
    nt = pl.num_programs(1)
    slot = i % 2
    tile = s * nt + i

    def start_fetch(tile_idx, dst_slot):
        base = tile_idx * tb

        def body(b, carry):
            ci = c_idx_ref[base + b]
            oi = o_idx_ref[base + b]
            pltpu.make_async_copy(c_hbm.at[ci], c_buf.at[dst_slot, b],
                                  c_sem.at[dst_slot]).start()
            pltpu.make_async_copy(o_hbm.at[oi], o_buf.at[dst_slot, b],
                                  o_sem.at[dst_slot]).start()
            return carry

        lax.fori_loop(0, tb, body, 0)

    @pl.when(i == 0)
    def _():
        out_ref[...] = jnp.zeros_like(out_ref)
        start_fetch(tile, slot)                  # prime the pipeline for this split

    # Wait for the current slot's 2*tb row copies.  One wait per issued copy,
    # with matching dst shape, is correct regardless of per-copy vs byte-count
    # semaphore accounting.
    def wait_body(b, carry):
        pltpu.make_async_copy(c_hbm.at[0], c_buf.at[slot, b], c_sem.at[slot]).wait()
        pltpu.make_async_copy(o_hbm.at[0], o_buf.at[slot, b], o_sem.at[slot]).wait()
        return carry

    lax.fori_loop(0, tb, wait_body, 0)

    # Prefetch the next tile into the other slot (overlaps with compute below).
    @pl.when(i + 1 < nt)
    def _():
        start_fetch(tile + 1, 1 - slot)

    c = c_buf[slot]                              # (tb, E_pad)
    o = o_buf[slot]                              # (tb, E_pad)
    # Row dot of augmented rows = <emb_c, emb_o> + bias_c + bias_o  (biases folded).
    inner = jnp.sum(c * o, axis=-1, keepdims=True)        # (tb, 1)
    diff = inner - coocs_ref[...]                          # (tb, 1)
    total = jnp.sum(w_ref[...] * diff * diff)              # scalar tile loss
    out_ref[...] += total                                  # broadcast into (1, 8, 128)


def glove_loss(center, outside, coocs, weighting, params, *, tb=128, n_split=2):
    """Pallas GloVe loss.  center/outside: (B,1) int; coocs/weighting: (B,1) f32."""
    c_tab, o_tab, cb_tab, ob_tab = params
    V, E = c_tab.shape
    B = center.shape[0]

    # ---- Fold biases into lane-padded augmented tables (layout plumbing). ----
    # TODO(synk): in a real training loop, keep the parameters stored in this
    # augmented (V, E_pad) layout so this O(V*E) re-pack is not done per call.
    E_pad = -(-(E + 2) // 128) * 128
    ones = jnp.ones((V, 1), jnp.float32)
    c_aug = jnp.concatenate(
        [c_tab.astype(jnp.float32), cb_tab.reshape(V, 1).astype(jnp.float32), ones], axis=1)
    o_aug = jnp.concatenate(
        [o_tab.astype(jnp.float32), ones, ob_tab.reshape(V, 1).astype(jnp.float32)], axis=1)
    pad_cols = E_pad - (E + 2)
    if pad_cols:
        c_aug = jnp.pad(c_aug, ((0, 0), (0, pad_cols)))
        o_aug = jnp.pad(o_aug, ((0, 0), (0, pad_cols)))

    # ---- Flatten, clamp indices, pad batch to a multiple of tb (weight 0). ----
    c_idx = jnp.clip(center.reshape(B), 0, V - 1).astype(jnp.int32)
    o_idx = jnp.clip(outside.reshape(B), 0, V - 1).astype(jnp.int32)
    coocs_f = coocs.reshape(B).astype(jnp.float32)
    w_f = weighting.reshape(B).astype(jnp.float32)

    B_pad = -(-B // tb) * tb
    if B_pad != B:
        pad = B_pad - B
        c_idx = jnp.pad(c_idx, (0, pad))
        o_idx = jnp.pad(o_idx, (0, pad))
        coocs_f = jnp.pad(coocs_f, (0, pad))
        w_f = jnp.pad(w_f, (0, pad))             # zero weight -> zero contribution

    num_tiles = B_pad // tb
    if n_split < 1 or num_tiles % n_split != 0:
        n_split = 1
    nt_inner = num_tiles // n_split

    coocs2 = coocs_f.reshape(B_pad, 1)
    w2 = w_f.reshape(B_pad, 1)

    kernel = functools.partial(_glove_kernel, tb)

    out = pl.pallas_call(
        kernel,
        out_shape=jax.ShapeDtypeStruct((n_split, 8, 128), jnp.float32),
        grid_spec=pltpu.PrefetchScalarGridSpec(
            num_scalar_prefetch=2,                       # center / outside indices -> SMEM
            grid=(n_split, nt_inner),
            in_specs=[
                pl.BlockSpec(memory_space=pl.ANY),       # augmented center table (HBM)
                pl.BlockSpec(memory_space=pl.ANY),       # augmented outside table (HBM)
                pl.BlockSpec((tb, 1), lambda s, i, c, o: (s * nt_inner + i, 0)),  # coocs
                pl.BlockSpec((tb, 1), lambda s, i, c, o: (s * nt_inner + i, 0)),  # weighting
            ],
            out_specs=pl.BlockSpec((1, 8, 128), lambda s, i, c, o: (s, 0, 0)),
            scratch_shapes=[
                pltpu.VMEM((2, tb, E_pad), jnp.float32),   # center row gather (double buf)
                pltpu.VMEM((2, tb, E_pad), jnp.float32),   # outside row gather (double buf)
                pltpu.SemaphoreType.DMA((2,)),             # center DMA sems (per slot)
                pltpu.SemaphoreType.DMA((2,)),             # outside DMA sems (per slot)
            ],
        ),
        compiler_params=pltpu.CompilerParams(
            dimension_semantics=("parallel", "arbitrary")),
    )(c_idx, o_idx, c_aug, o_aug, coocs2, w2)

    return jnp.sum(out[:, 0, 0])                  # sum the per-split partial losses


def glove_loss_ref(center, outside, coocs, weighting, params):
    """Pure-JAX reference mirroring the PyTorch forward exactly."""
    c_tab, o_tab, cb_tab, ob_tab = params
    ci = center.reshape(-1)
    oi = outside.reshape(-1)
    ce = c_tab[ci]                                      # (B, E)
    oe = o_tab[oi]                                      # (B, E)
    inner = jnp.sum(oe * ce, axis=-1, keepdims=True)    # (B, 1) == bmm(...).squeeze(2)
    loss = weighting * (inner + cb_tab[ci] + ob_tab[oi] - coocs) ** 2
    return jnp.sum(loss)


def init_glove_params(key, voc_size, emb_size):
    """nn.Embedding default init: N(0, 1)."""
    k1, k2, k3, k4 = jax.random.split(key, 4)
    c_tab = jax.random.normal(k1, (voc_size, emb_size), jnp.float32)
    o_tab = jax.random.normal(k2, (voc_size, emb_size), jnp.float32)
    cb_tab = jax.random.normal(k3, (voc_size, 1), jnp.float32)
    ob_tab = jax.random.normal(k4, (voc_size, 1), jnp.float32)
    return c_tab, o_tab, cb_tab, ob_tab


if __name__ == "__main__":
    # TODO(synk): `get_vector` / pickle-loaded word2index lookup is host-side glue
    # (not part of forward) and is intentionally not implemented as a kernel.
    VOC_SIZE, EMB_SIZE, BATCH = 500, 32, 200   # BATCH not a multiple of tb: exercises padding

    key = jax.random.PRNGKey(0)
    kp, kc, ko, kco, kw = jax.random.split(key, 5)

    params = init_glove_params(kp, VOC_SIZE, EMB_SIZE)
    center = jax.random.randint(kc, (BATCH, 1), 0, VOC_SIZE, dtype=jnp.int32)
    outside = jax.random.randint(ko, (BATCH, 1), 0, VOC_SIZE, dtype=jnp.int32)
    coocs = jax.random.uniform(kco, (BATCH, 1), jnp.float32, 0.0, 5.0)
    weighting = jax.random.uniform(kw, (BATCH, 1), jnp.float32, 0.0, 1.0)

    loss = glove_loss(center, outside, coocs, weighting, params, tb=128, n_split=2)
    loss = jax.block_until_ready(loss)

    ref = glove_loss_ref(center, outside, coocs, weighting, params)
    assert jnp.isfinite(loss), loss
    assert jnp.allclose(loss, ref, rtol=1e-4, atol=1e-2), (loss, ref)

    print("KERNEL_OK")
</pallas_src>

<mosaic_0001>
module attributes {stable_mosaic.version = 11 : i64} {
  func.func @_glove_kernel(%arg0: i32, %arg1: i32, %arg2: memref<256xi32, #tpu.memory_space<smem>>, %arg3: memref<256xi32, #tpu.memory_space<smem>>, %arg4: memref<500x128xf32, #tpu.memory_space<any>>, %arg5: memref<500x128xf32, #tpu.memory_space<any>>, %arg6: memref<128x1xf32, #tpu.memory_space<vmem>>, %arg7: memref<128x1xf32, #tpu.memory_space<vmem>>, %arg8: memref<1x8x128xf32, #tpu.memory_space<vmem>>, %arg9: memref<2x128x128xf32, #tpu.memory_space<vmem>>, %arg10: memref<2x128x128xf32, #tpu.memory_space<vmem>>, %arg11: memref<2x!tpu.dma_semaphore, #tpu.memory_space<semaphore_mem>>, %arg12: memref<2x!tpu.dma_semaphore, #tpu.memory_space<semaphore_mem>>) attributes {dimension_semantics = [#tpu.dimension_semantics<parallel>, #tpu.dimension_semantics<arbitrary>], iteration_bounds = array<i64: 2, 1>, scalar_prefetch = 2 : i64, scratch_operands = 4 : i64, tpu.core_type = #tpu.core_type<tc>, window_params = [{}, {}, {transform_indices = @transform_2, window_bounds = array<i64: 128, 1>}, {transform_indices = @transform_3, window_bounds = array<i64: 128, 1>}, {transform_indices = @transform_4, window_bounds = array<i64: 1, 8, 128>}]} {
    %c2_i32 = arith.constant 2 : i32
    %c0_i32 = arith.constant 0 : i32
    %0 = arith.cmpi eq, %c2_i32, %c0_i32 : i32
    %c1_i32 = arith.constant 1 : i32
    %1 = arith.select %0, %c1_i32, %c2_i32 : i32
    %2 = arith.remsi %arg1, %1 : i32
    %c0_i32_0 = arith.constant 0 : i32
    %3 = arith.cmpi ne, %2, %c0_i32_0 : i32
    %c0_i32_1 = arith.constant 0 : i32
    %4 = arith.cmpi slt, %2, %c0_i32_1 : i32
    %c0_i32_2 = arith.constant 0 : i32
    %5 = arith.cmpi slt, %1, %c0_i32_2 : i32
    %6 = arith.xori %4, %5 : i1
    %7 = arith.andi %6, %3 : i1
    %8 = arith.addi %2, %1 : i32
    %9 = arith.select %7, %8, %2 : i32
    %c1_i32_3 = arith.constant 1 : i32
    %10 = arith.muli %arg0, %c1_i32_3 : i32
    %11 = arith.addi %10, %arg1 : i32
    %c0_i32_4 = arith.constant 0 : i32
    %12 = arith.cmpi eq, %arg1, %c0_i32_4 : i32
    %13 = arith.extui %12 : i1 to i32
    %c0_i32_5 = arith.constant 0 : i32
    %14 = arith.cmpi ne, %13, %c0_i32_5 : i32
    scf.if %14 {
      %cst_26 = arith.constant 0.000000e+00 : f32
      %42 = vector.broadcast %cst_26 : f32 to vector<1x8x128xf32>
      %c0_27 = arith.constant 0 : index
      %c0_28 = arith.constant 0 : index
      %c0_29 = arith.constant 0 : index
      %43 = vector.load %arg8[%c0_27, %c0_28, %c0_29] : memref<1x8x128xf32, #tpu.memory_space<vmem>>, vector<1x8x128xf32>
      tpu.vector_store %arg8[%c0_27, %c0_28, %c0_29], %42 {strides = array<i32>} : memref<1x8x128xf32, #tpu.memory_space<vmem>>, vector<1x8x128xf32>,
      %c128_i32_30 = arith.constant 128 : i32
      %44 = arith.muli %11, %c128_i32_30 : i32
      %c0_i32_31 = arith.constant 0 : i32
      %c128_i32_32 = arith.constant 128 : i32
      %45 = arith.addi %c0_i32_31, %c128_i32_32 : i32
      %c1_i32_33 = arith.constant 1 : i32
      scf.for %arg13 = %c0_i32_31 to %45 step %c1_i32_33  : i32 {
        %46 = arith.addi %44, %arg13 : i32
        %47 = arith.index_cast %46 : i32 to index
        %48 = memref.load %arg2[%47] : memref<256xi32, #tpu.memory_space<smem>>
        %49 = arith.addi %44, %arg13 : i32
        %50 = arith.index_cast %49 : i32 to index
        %51 = memref.load %arg3[%50] : memref<256xi32, #tpu.memory_space<smem>>
        %c0_i32_35 = arith.constant 0 : i32
        %52 = tpu.memref_slice %arg4[%48, %c0_i32_35] : memref<500x128xf32, #tpu.memory_space<any>> -> memref<1x128xf32, #tpu.memory_space<any>>
        %53 = tpu.memref_squeeze %52 : memref<1x128xf32, #tpu.memory_space<any>> -> memref<128xf32, #tpu.memory_space<any>>
        %c0_i32_36 = arith.constant 0 : i32
        %54 = tpu.memref_slice %arg9[%9, %arg13, %c0_i32_36] : memref<2x128x128xf32, #tpu.memory_space<vmem>> -> memref<1x1x128xf32, #tpu.memory_space<vmem>>
        %55 = tpu.memref_squeeze %54 : memref<1x1x128xf32, #tpu.memory_space<vmem>> -> memref<128xf32, #tpu.memory_space<vmem>>
        %56 = tpu.memref_slice %arg11[%9] : memref<2x!tpu.dma_semaphore, #tpu.memory_space<semaphore_mem>> -> memref<1x!tpu.dma_semaphore, #tpu.memory_space<semaphore_mem>>
        %57 = tpu.memref_squeeze %56 : memref<1x!tpu.dma_semaphore, #tpu.memory_space<semaphore_mem>> -> memref<!tpu.dma_semaphore, #tpu.memory_space<semaphore_mem>>
        tpu.enqueue_dma source(%53 : memref<128xf32, #tpu.memory_space<any>>) target(%55 : memref<128xf32, #tpu.memory_space<vmem>>) target_semaphore(%57 : memref<!tpu.dma_semaphore, #tpu.memory_space<semaphore_mem>>)
        %c0_i32_37 = arith.constant 0 : i32
        %58 = tpu.memref_slice %arg5[%51, %c0_i32_37] : memref<500x128xf32, #tpu.memory_space<any>> -> memref<1x128xf32, #tpu.memory_space<any>>
        %59 = tpu.memref_squeeze %58 : memref<1x128xf32, #tpu.memory_space<any>> -> memref<128xf32, #tpu.memory_space<any>>
        %c0_i32_38 = arith.constant 0 : i32
        %60 = tpu.memref_slice %arg10[%9, %arg13, %c0_i32_38] : memref<2x128x128xf32, #tpu.memory_space<vmem>> -> memref<1x1x128xf32, #tpu.memory_space<vmem>>
        %61 = tpu.memref_squeeze %60 : memref<1x1x128xf32, #tpu.memory_space<vmem>> -> memref<128xf32, #tpu.memory_space<vmem>>
        %62 = tpu.memref_slice %arg12[%9] : memref<2x!tpu.dma_semaphore, #tpu.memory_space<semaphore_mem>> -> memref<1x!tpu.dma_semaphore, #tpu.memory_space<semaphore_mem>>
        %63 = tpu.memref_squeeze %62 : memref<1x!tpu.dma_semaphore, #tpu.memory_space<semaphore_mem>> -> memref<!tpu.dma_semaphore, #tpu.memory_space<semaphore_mem>>
        tpu.enqueue_dma source(%59 : memref<128xf32, #tpu.memory_space<any>>) target(%61 : memref<128xf32, #tpu.memory_space<vmem>>) target_semaphore(%63 : memref<!tpu.dma_semaphore, #tpu.memory_space<semaphore_mem>>)
      }
      %c128_i32_34 = arith.constant 128 : i32
    } else {
    }
    %c0_i32_6 = arith.constant 0 : i32
    %c128_i32 = arith.constant 128 : i32
    %15 = arith.addi %c0_i32_6, %c128_i32 : i32
    %c1_i32_7 = arith.constant 1 : i32
    scf.for %arg13 = %c0_i32_6 to %15 step %c1_i32_7  : i32 {
      %c0_i32_26 = arith.constant 0 : i32
      %c0_i32_27 = arith.constant 0 : i32
      %42 = tpu.memref_slice %arg4[%c0_i32_26, %c0_i32_27] : memref<500x128xf32, #tpu.memory_space<any>> -> memref<1x128xf32, #tpu.memory_space<any>>
      %43 = tpu.memref_squeeze %42 : memref<1x128xf32, #tpu.memory_space<any>> -> memref<128xf32, #tpu.memory_space<any>>
      %c0_i32_28 = arith.constant 0 : i32
      %44 = tpu.memref_slice %arg9[%9, %arg13, %c0_i32_28] : memref<2x128x128xf32, #tpu.memory_space<vmem>> -> memref<1x1x128xf32, #tpu.memory_space<vmem>>
      %45 = tpu.memref_squeeze %44 : memref<1x1x128xf32, #tpu.memory_space<vmem>> -> memref<128xf32, #tpu.memory_space<vmem>>
      %46 = tpu.memref_slice %arg11[%9] : memref<2x!tpu.dma_semaphore, #tpu.memory_space<semaphore_mem>> -> memref<1x!tpu.dma_semaphore, #tpu.memory_space<semaphore_mem>>
      %47 = tpu.memref_squeeze %46 : memref<1x!tpu.dma_semaphore, #tpu.memory_space<semaphore_mem>> -> memref<!tpu.dma_semaphore, #tpu.memory_space<semaphore_mem>>
      tpu.wait_dma2 semaphore(%47 : memref<!tpu.dma_semaphore, #tpu.memory_space<semaphore_mem>>) src(%43 : memref<128xf32, #tpu.memory_space<any>>) dst(%45 : memref<128xf32, #tpu.memory_space<vmem>>)
      %c0_i32_29 = arith.constant 0 : i32
      %c0_i32_30 = arith.constant 0 : i32
      %48 = tpu.memref_slice %arg5[%c0_i32_29, %c0_i32_30] : memref<500x128xf32, #tpu.memory_space<any>> -> memref<1x128xf32, #tpu.memory_space<any>>
      %49 = tpu.memref_squeeze %48 : memref<1x128xf32, #tpu.memory_space<any>> -> memref<128xf32, #tpu.memory_space<any>>
      %c0_i32_31 = arith.constant 0 : i32
      %50 = tpu.memref_slice %arg10[%9, %arg13, %c0_i32_31] : memref<2x128x128xf32, #tpu.memory_space<vmem>> -> memref<1x1x128xf32, #tpu.memory_space<vmem>>
      %51 = tpu.memref_squeeze %50 : memref<1x1x128xf32, #tpu.memory_space<vmem>> -> memref<128xf32, #tpu.memory_space<vmem>>
      %52 = tpu.memref_slice %arg12[%9] : memref<2x!tpu.dma_semaphore, #tpu.memory_space<semaphore_mem>> -> memref<1x!tpu.dma_semaphore, #tpu.memory_space<semaphore_mem>>
      %53 = tpu.memref_squeeze %52 : memref<1x!tpu.dma_semaphore, #tpu.memory_space<semaphore_mem>> -> memref<!tpu.dma_semaphore, #tpu.memory_space<semaphore_mem>>
      tpu.wait_dma2 semaphore(%53 : memref<!tpu.dma_semaphore, #tpu.memory_space<semaphore_mem>>) src(%49 : memref<128xf32, #tpu.memory_space<any>>) dst(%51 : memref<128xf32, #tpu.memory_space<vmem>>)
    }
    %c128_i32_8 = arith.constant 128 : i32
    %c1_i32_9 = arith.constant 1 : i32
    %16 = arith.addi %arg1, %c1_i32_9 : i32
    %c1_i32_10 = arith.constant 1 : i32
    %17 = arith.cmpi slt, %16, %c1_i32_10 : i32
    %18 = arith.extui %17 : i1 to i32
    %c0_i32_11 = arith.constant 0 : i32
    %19 = arith.cmpi ne, %18, %c0_i32_11 : i32
    scf.if %19 {
      %c1_i32_26 = arith.constant 1 : i32
      %42 = arith.addi %11, %c1_i32_26 : i32
      %c1_i32_27 = arith.constant 1 : i32
      %43 = arith.subi %c1_i32_27, %9 : i32
      %c128_i32_28 = arith.constant 128 : i32
      %44 = arith.muli %42, %c128_i32_28 : i32
      %c0_i32_29 = arith.constant 0 : i32
      %c128_i32_30 = arith.constant 128 : i32
      %45 = arith.addi %c0_i32_29, %c128_i32_30 : i32
      %c1_i32_31 = arith.constant 1 : i32
      scf.for %arg13 = %c0_i32_29 to %45 step %c1_i32_31  : i32 {
        %46 = arith.addi %44, %arg13 : i32
        %47 = arith.index_cast %46 : i32 to index
        %48 = memref.load %arg2[%47] : memref<256xi32, #tpu.memory_space<smem>>
        %49 = arith.addi %44, %arg13 : i32
        %50 = arith.index_cast %49 : i32 to index
        %51 = memref.load %arg3[%50] : memref<256xi32, #tpu.memory_space<smem>>
        %c0_i32_33 = arith.constant 0 : i32
        %52 = tpu.memref_slice %arg4[%48, %c0_i32_33] : memref<500x128xf32, #tpu.memory_space<any>> -> memref<1x128xf32, #tpu.memory_space<any>>
        %53 = tpu.memref_squeeze %52 : memref<1x128xf32, #tpu.memory_space<any>> -> memref<128xf32, #tpu.memory_space<any>>
        %c0_i32_34 = arith.constant 0 : i32
        %54 = tpu.memref_slice %arg9[%43, %arg13, %c0_i32_34] : memref<2x128x128xf32, #tpu.memory_space<vmem>> -> memref<1x1x128xf32, #tpu.memory_space<vmem>>
        %55 = tpu.memref_squeeze %54 : memref<1x1x128xf32, #tpu.memory_space<vmem>> -> memref<128xf32, #tpu.memory_space<vmem>>
        %56 = tpu.memref_slice %arg11[%43] : memref<2x!tpu.dma_semaphore, #tpu.memory_space<semaphore_mem>> -> memref<1x!tpu.dma_semaphore, #tpu.memory_space<semaphore_mem>>
        %57 = tpu.memref_squeeze %56 : memref<1x!tpu.dma_semaphore, #tpu.memory_space<semaphore_mem>> -> memref<!tpu.dma_semaphore, #tpu.memory_space<semaphore_mem>>
        tpu.enqueue_dma source(%53 : memref<128xf32, #tpu.memory_space<any>>) target(%55 : memref<128xf32, #tpu.memory_space<vmem>>) target_semaphore(%57 : memref<!tpu.dma_semaphore, #tpu.memory_space<semaphore_mem>>)
        %c0_i32_35 = arith.constant 0 : i32
        %58 = tpu.memref_slice %arg5[%51, %c0_i32_35] : memref<500x128xf32, #tpu.memory_space<any>> -> memref<1x128xf32, #tpu.memory_space<any>>
        %59 = tpu.memref_squeeze %58 : memref<1x128xf32, #tpu.memory_space<any>> -> memref<128xf32, #tpu.memory_space<any>>
        %c0_i32_36 = arith.constant 0 : i32
        %60 = tpu.memref_slice %arg10[%43, %arg13, %c0_i32_36] : memref<2x128x128xf32, #tpu.memory_space<vmem>> -> memref<1x1x128xf32, #tpu.memory_space<vmem>>
        %61 = tpu.memref_squeeze %60 : memref<1x1x128xf32, #tpu.memory_space<vmem>> -> memref<128xf32, #tpu.memory_space<vmem>>
        %62 = tpu.memref_slice %arg12[%43] : memref<2x!tpu.dma_semaphore, #tpu.memory_space<semaphore_mem>> -> memref<1x!tpu.dma_semaphore, #tpu.memory_space<semaphore_mem>>
        %63 = tpu.memref_squeeze %62 : memref<1x!tpu.dma_semaphore, #tpu.memory_space<semaphore_mem>> -> memref<!tpu.dma_semaphore, #tpu.memory_space<semaphore_mem>>
        tpu.enqueue_dma source(%59 : memref<128xf32, #tpu.memory_space<any>>) target(%61 : memref<128xf32, #tpu.memory_space<vmem>>) target_semaphore(%63 : memref<!tpu.dma_semaphore, #tpu.memory_space<semaphore_mem>>)
      }
      %c128_i32_32 = arith.constant 128 : i32
    } else {
    }
    %20 = arith.index_cast %9 : i32 to index
    %c0 = arith.constant 0 : index
    %c0_12 = arith.constant 0 : index
    %21 = vector.load %arg9[%20, %c0, %c0_12] : memref<2x128x128xf32, #tpu.memory_space<vmem>>, vector<1x128x128xf32>
    %22 = vector.shape_cast %21 : vector<1x128x128xf32> to vector<128x128xf32>
    %23 = arith.index_cast %9 : i32 to index
    %c0_13 = arith.constant 0 : index
    %c0_14 = arith.constant 0 : index
    %24 = vector.load %arg10[%23, %c0_13, %c0_14] : memref<2x128x128xf32, #tpu.memory_space<vmem>>, vector<1x128x128xf32>
    %25 = vector.shape_cast %24 : vector<1x128x128xf32> to vector<128x128xf32>
    %26 = arith.mulf %22, %25 : vector<128x128xf32>
    %cst = arith.constant dense<0.000000e+00> : vector<128xf32>
    %27 = vector.multi_reduction <add>, %26, %cst [1] : vector<128x128xf32> to vector<128xf32>
    %28 = vector.shape_cast %27 : vector<128xf32> to vector<128x1xf32>
    %c0_15 = arith.constant 0 : index
    %c0_16 = arith.constant 0 : index
    %29 = vector.load %arg6[%c0_15, %c0_16] : memref<128x1xf32, #tpu.memory_space<vmem>>, vector<128x1xf32>
    %30 = arith.subf %28, %29 : vector<128x1xf32>
    %c0_17 = arith.constant 0 : index
    %c0_18 = arith.constant 0 : index
    %31 = vector.load %arg7[%c0_17, %c0_18] : memref<128x1xf32, #tpu.memory_space<vmem>>, vector<128x1xf32>
    %32 = arith.mulf %31, %30 : vector<128x1xf32>
    %33 = arith.mulf %32, %30 : vector<128x1xf32>
    %34 = vector.shape_cast %33 : vector<128x1xf32> to vector<1x128x1xf32>
    %cst_19 = arith.constant dense<0.000000e+00> : vector<1xf32>
    %35 = vector.multi_reduction <add>, %34, %cst_19 [1, 2] : vector<1x128x1xf32> to vector<1xf32>
    %36 = vector.shape_cast %35 : vector<1xf32> to vector<1x1x1xf32>
    %37 = vector.extract %36[0, 0, 0] : f32 from vector<1x1x1xf32>
    %c0_20 = arith.constant 0 : index
    %c0_21 = arith.constant 0 : index
    %c0_22 = arith.constant 0 : index
    %38 = vector.load %arg8[%c0_20, %c0_21, %c0_22] : memref<1x8x128xf32, #tpu.memory_space<vmem>>, vector<1x8x128xf32>
    %39 = vector.broadcast %37 : f32 to vector<1x8x128xf32>
    %40 = arith.addf %38, %39 : vector<1x8x128xf32>
    %c0_23 = arith.constant 0 : index
    %c0_24 = arith.constant 0 : index
    %c0_25 = arith.constant 0 : index
    %41 = vector.load %arg8[%c0_23, %c0_24, %c0_25] : memref<1x8x128xf32, #tpu.memory_space<vmem>>, vector<1x8x128xf32>
    tpu.vector_store %arg8[%c0_23, %c0_24, %c0_25], %40 {strides = array<i32>} : memref<1x8x128xf32, #tpu.memory_space<vmem>>, vector<1x8x128xf32>,
    return
  }
  func.func @transform_2(%arg0: i32, %arg1: i32, %arg2: memref<256xi32, #tpu.memory_space<smem>>, %arg3: memref<256xi32, #tpu.memory_space<smem>>) -> (i32, i32) {
    %c1_i32 = arith.constant 1 : i32
    %0 = arith.muli %arg0, %c1_i32 : i32
    %1 = arith.addi %0, %arg1 : i32
    %c0_i32 = arith.constant 0 : i32
    %c0_i32_0 = arith.constant 0 : i32
    return %1, %c0_i32 : i32, i32
  }
  func.func @transform_3(%arg0: i32, %arg1: i32, %arg2: memref<256xi32, #tpu.memory_space<smem>>, %arg3: memref<256xi32, #tpu.memory_space<smem>>) -> (i32, i32) {
    %c1_i32 = arith.constant 1 : i32
    %0 = arith.muli %arg0, %c1_i32 : i32
    %1 = arith.addi %0, %arg1 : i32
    %c0_i32 = arith.constant 0 : i32
    %c0_i32_0 = arith.constant 0 : i32
    return %1, %c0_i32 : i32, i32
  }
  func.func @transform_4(%arg0: i32, %arg1: i32, %arg2: memref<256xi32, #tpu.memory_space<smem>>, %arg3: memref<256xi32, #tpu.memory_space<smem>>) -> (i32, i32, i32) {
    %c0_i32 = arith.constant 0 : i32
    %c0_i32_0 = arith.constant 0 : i32
    %c0_i32_1 = arith.constant 0 : i32
    return %arg0, %c0_i32, %c0_i32_0 : i32, i32, i32
  }
}

</mosaic_0001>

<llo_original>
// kernel: tpu_custom_call.1
$region0: #{tpu_custom_call.1}
  #allocation0 [shape = 'u32[]', space=smem, size = 0x4, offset = 0x4, fixed_abs, tag = 'smem constant byte address 0x4 - core index']
  #allocation1 [shape = 'u32[144,128]{1,0:T(1,128)}', space=vmem, size = 0x12000, scoped, tag = 'internal scratch']
  #allocation2 [shape = 'f32[2,128,128]{2,1,0:T(8,128)}', space=vmem, size = 0x20000, scoped, tag = 'scratch operand']
  #allocation3 [shape = 'f32[2,128,128]{2,1,0:T(8,128)}', space=vmem, size = 0x20000, scoped, tag = 'scratch operand']
  #allocation4 [shape = 's32[2]{0}', space=sflag, size = 0x8, scoped, tag = 'scratch operand']
  #allocation5 [shape = 's32[2]{0}', space=sflag, size = 0x8, scoped, tag = 'scratch operand']
  #allocation6 [shape = 's32[1]{0}', space=sflag, size = 0x4, scoped, tag = 'scoped memory for tpu_custom_call.1']
  #allocation7 [shape = 'u8[1024]{0}', space=smem, size = 0x400, scoped, tag = 'prefetched SMEM operand 0']
  #allocation8 [shape = 'u8[1024]{0}', space=smem, size = 0x400, scoped, tag = 'prefetched SMEM operand 1']
  #allocation11 [shape = 's32[]', space=sflag, size = 0x4, offset = 0, fixed_abs, tag = 'sflag constant byte address 0x0 - dummy sync flag']
  #allocation12 [shape = 's32[]', space=sflag, size = 0x4, offset = 0, fixed_abs, tag = 'sflag constant byte address 0x0 - dummy sync flag']
  #allocation13 [shape = 's32[]', space=sflag, size = 0x4, offset = 0, fixed_abs, tag = 'sflag constant byte address 0x0 - dummy sync flag']
  #allocation14 [shape = 'u32[]', space=smem, size = 0x4, offset = 0x44, fixed_abs, tag = 'smem constant byte address 0x44 - assertion arg 0']
  #allocation15 [shape = 'u32[]', space=smem, size = 0x4, offset = 0x48, fixed_abs, tag = 'smem constant byte address 0x48 - assertion arg 1']
  #allocation16 [shape = 's32[]', space=sflag, size = 0x4, offset = 0, fixed_abs, tag = 'sflag constant byte address 0x0 - dummy sync flag']
  #allocation17 [shape = 's32[]', space=sflag, size = 0x4, offset = 0, fixed_abs, tag = 'sflag constant byte address 0x0 - dummy sync flag']
  #allocation18 [shape = 's32[]', space=sflag, size = 0x4, offset = 0, fixed_abs, tag = 'sflag constant byte address 0x0 - dummy sync flag']
  %s0 = inlined_call_operand.vmem [shape: s32[256], index: 0, kind: input, shape index: {}]
  %s1 = inlined_call_operand.vmem [shape: s32[256], index: 1, kind: input, shape index: {}]
  %s2 = inlined_call_operand.vmem [shape: f32[500,128], index: 2, kind: input, shape index: {}]
  %s3 = inlined_call_operand.hbm [shape: f32[500,128], index: 3, kind: input, shape index: {}]
  %s4 = inlined_call_operand.vmem [shape: f32[256,1], index: 4, kind: input, shape index: {}]
  %s5 = inlined_call_operand.vmem [shape: f32[256,1], index: 5, kind: input, shape index: {}]
  %s6 = inlined_call_operand.hbm [shape: f32[2,8,128], index: 6, kind: output, shape index: {}]
  %s7 = sld [smem:[#allocation0]]
  $region138: #{tpu_custom_call.1} parent=0
    _
  %s9 = ssub.s32 1, %s7
  %s10 = scalar_select 0, %s9, %s7
  %s11 = sshll.u32 %s0, 4
  %s12 = int_to_ptr.vmem [resolvable:$true] %s11
  %14 = dma.vmem_to_smem %s12, 32, [#allocation7], [#allocation6]
  %s15 = sshll.u32 %s1, 4
  %s16 = int_to_ptr.vmem [resolvable:$true] %s15
  %18 = dma.vmem_to_smem %s16, 32, [#allocation8], [#allocation6]
  %19 = dma.done [#allocation6], 64
  %20 = sfence
  $region1: #{tpu_custom_call.1} parent=0
    #allocation9 [shape = 'u8[8192]{0}', space=vmem, size = 0x2000, scoped, tag = 'output window, operand 0']
    #allocation10 [shape = 's32[2]{0}', space=sflag, size = 0x8, scoped, tag = 'scoped memory for tpu_custom_call.1']
    %21 = vsyncpa [#allocation10], 0
    %s22 = scalar_lea.sflag [#allocation10], 1
    %23 = vsyncpa %s22, 0
    loop: start=0, step=1, limit=4
    $region2: #{tpu_custom_call.1} parent=1 // loop_pre_header
      _
    $region3: #{tpu_custom_call.1} parent=1 // loop_header
      %s25 = sphi 0, %s29
      %p26 = scmp.ge.s32.totalorder %s25, 4
      %s32 = sphi 0, %s44
      %s33 = sphi 0, %s40
      %s34 = sphi 0, %s32
      %s35 = sphi 0, %s33
      %s36 = sphi 0, %s34
      %s37 = sphi 0, %s35
      %s49 = sphi 0, %s51
      %s52 = sphi 0, %s49
      %s53 = sphi 0, %s52
      %s69 = sphi 0, %s53
      %s77 = sphi 0, %s79
      %s80 = sphi 0, %s77
      %s81 = sphi 0, %s80
      %s97 = sphi 0, %s81
      %s103 = sphi 0, %s105
      %s106 = sphi 0, %s103
      %s107 = sphi 0, %s106
      %s123 = sphi 0, %s107
    $region4: #{tpu_custom_call.1} parent=1 // loop_header_branch
      %28 = sbr.rel (%p26) target = $region8
    $region5: #{tpu_custom_call.1} parent=1 // loop_body
      %s30 = ssub.s32 %s25, 1
      %s31 = ssub.s32 %s25, 2
      %s38 = sadd.s32 1, %s33
      %p39 = scmp.ge.s32.totalorder %s38, 1
      %s40 = scalar_select %p39, 0, %s38
      %s41 = sadd.s32 1, %s32
      %s42 = scalar_select %p39, %s41, %s32
      %p43 = scmp.ge.s32.totalorder %s42, 2
      %s44 = scalar_select %p43, 0, %s42
      %s45 = sadd.s32 %s32, %s33
      %s46 = sadd.s32 %s44, %s40
      %s47 = ssub.s32 %s45, %s46
      %p48 = scmp.eq.s32.totalorder %s47, 0
      %s50 = sadd.s32 %s49, 1
      %s51 = scalar_select %p48, %s49, %s50
      %p54 = pneg %p48
      %p55 = scmp.eq.s32.totalorder %s25, 1
      %p56 = por %p54, %p55
      %p57 = scmp.ne.s32.totalorder %s49, %s52
      %p58 = scmp.eq.s32.totalorder %s25, 0
      %p59 = por %p57, %p58
      %p60 = scmp.ne.s32.totalorder %s49, %s52
      %p61 = scmp.eq.s32.totalorder %s30, 1
      %p62 = por %p60, %p61
      %p63 = scmp.ne.s32.totalorder %s52, %s53
      %p64 = scmp.eq.s32.totalorder %s30, 0
      %p65 = por %p63, %p64
      %p66 = scmp.ne.s32.totalorder %s52, %s53
      %p67 = scmp.eq.s32.totalorder %s31, 1
      %p68 = por %p66, %p67
      %p70 = scmp.ne.s32.totalorder %s53, %s69
      %p71 = scmp.eq.s32.totalorder %s31, 0
      %p72 = por %p70, %p71
      %s73 = sadd.s32 %s32, %s33
      %s74 = sadd.s32 %s44, %s40
      %s75 = ssub.s32 %s73, %s74
      %p76 = scmp.eq.s32.totalorder %s75, 0
      %s78 = sadd.s32 %s77, 1
      %s79 = scalar_select %p76, %s77, %s78
      %p82 = pneg %p76
      %p83 = scmp.eq.s32.totalorder %s25, 1
      %p84 = por %p82, %p83
      %p85 = scmp.ne.s32.totalorder %s77, %s80
      %p86 = scmp.eq.s32.totalorder %s25, 0
      %p87 = por %p85, %p86
      %p88 = scmp.ne.s32.totalorder %s77, %s80
      %p89 = scmp.eq.s32.totalorder %s30, 1
      %p90 = por %p88, %p89
      %p91 = scmp.ne.s32.totalorder %s80, %s81
      %p92 = scmp.eq.s32.totalorder %s30, 0
      %p93 = por %p91, %p92
      %p94 = scmp.ne.s32.totalorder %s80, %s81
      %p95 = scmp.eq.s32.totalorder %s31, 1
      %p96 = por %p94, %p95
      %p98 = scmp.ne.s32.totalorder %s81, %s97
      %p99 = scmp.eq.s32.totalorder %s31, 0
      %p100 = por %p98, %p99
      %s101 = ssub.s32 %s32, %s44
      %p102 = scmp.eq.s32.totalorder %s101, 0
      %s104 = sadd.s32 %s103, 1
      %s105 = scalar_select %p102, %s103, %s104
      %p108 = pneg %p102
      %p109 = scmp.eq.s32.totalorder %s25, 1
      %p110 = por %p108, %p109
      %p111 = scmp.ne.s32.totalorder %s103, %s106
      %p112 = scmp.eq.s32.totalorder %s25, 0
      %p113 = por %p111, %p112
      %p114 = scmp.ne.s32.totalorder %s103, %s106
      %p115 = scmp.eq.s32.totalorder %s30, 1
      %p116 = por %p114, %p115
      %p117 = scmp.ne.s32.totalorder %s106, %s107
      %p118 = scmp.eq.s32.totalorder %s30, 0
      %p119 = por %p117, %p118
      %p120 = scmp.ne.s32.totalorder %s106, %s107
      %p121 = scmp.eq.s32.totalorder %s31, 1
      %p122 = por %p120, %p121
      %p124 = scmp.ne.s32.totalorder %s107, %s123
      %p125 = scmp.eq.s32.totalorder %s31, 0
      %p126 = por %p124, %p125
      %p127 = scmp.le.s32.totalorder 1, %s25
      %p128 = scmp.lt.s32.totalorder %s25, 3
      %p129 = pnand %p127, %p128
      %p130 = pneg %p129
      // Predicated region
      $region9: #{tpu_custom_call.1} parent=5 // pred_check
        _
      $region10: #{tpu_custom_call.1} parent=5 // pred_check_branch
        %132 = sbr.rel (%p129) target = $region12
      $region11: #{tpu_custom_call.1} parent=5 // pred_region
        %s133 = ssub.s32 %s25, 1
      $region12: #{tpu_custom_call.1} parent=5 // pred_fallthru
        _
      %p134 = scmp.lt.s32.totalorder %s25, 2
      // Predicated region
      $region13: #{tpu_custom_call.1} parent=5 // pred_check
        %p135 = pneg %p134
      $region14: #{tpu_custom_call.1} parent=5 // pred_check_branch
        %137 = sbr.rel (%p135) target = $region16
      $region15: #{tpu_custom_call.1} parent=5 // pred_region
        // Predicated region
        $region17: #{tpu_custom_call.1} parent=15 // pred_check
          %p138 = pneg %p59
        $region18: #{tpu_custom_call.1} parent=15 // pred_check_branch
          %140 = sbr.rel (%p138) target = $region20
        $region19: #{tpu_custom_call.1} parent=15 // pred_region
          %s141 = sadd.s32 %s32, %s33
          %s142 = smul.u32 16, %s141
          %p143 = scmp.lt.s32.totalorder %s142, 31
          %s144 = scalar_select %p143, %s142, 31
          %s145 = smul.addr %s144, 8
          %s146 = scalar_lea.vmem %s4, %s145
          %s147 = sadd.s32 %s32, %s33
          %s148 = smul.u32 16, %s147
        $region20: #{tpu_custom_call.1} parent=15 // pred_fallthru
          _
        // Predicated region
        $region21: #{tpu_custom_call.1} parent=15 // pred_check
          %p149 = pneg %p87
        $region22: #{tpu_custom_call.1} parent=15 // pred_check_branch
          %151 = sbr.rel (%p149) target = $region24
        $region23: #{tpu_custom_call.1} parent=15 // pred_region
          %s152 = sadd.s32 %s32, %s33
          %s153 = smul.u32 16, %s152
          %p154 = scmp.lt.s32.totalorder %s153, 31
          %s155 = scalar_select %p154, %s153, 31
          %s156 = smul.addr %s155, 8
          %s157 = scalar_lea.vmem %s5, %s156
          %s158 = sadd.s32 %s32, %s33
          %s159 = smul.u32 16, %s158
        $region24: #{tpu_custom_call.1} parent=15 // pred_fallthru
          _
      $region16: #{tpu_custom_call.1} parent=5 // pred_fallthru
        _
      %p160 = scmp.le.s32.totalorder 1, %s25
      %p161 = scmp.lt.s32.totalorder %s25, 3
      %p162 = pnand %p160, %p161
      %p163 = pneg %p162
      // Predicated region
      $region25: #{tpu_custom_call.1} parent=5 // pred_check
        _
      $region26: #{tpu_custom_call.1} parent=5 // pred_check_branch
        %165 = sbr.rel (%p162) target = $region28
      $region27: #{tpu_custom_call.1} parent=5 // pred_region
        %s166 = ssub.s32 %s25, 1
        %s167 = sadd.s32 %s34, %s35
        %s168 = smul.u32 16, %s167
        %p169 = scmp.lt.s32.totalorder %s168, 31
        %s170 = scalar_select %p169, %s168, 31
        %s171 = smul.addr %s170, 8
        %s172 = scalar_lea.vmem %s4, %s171
        %p173 = pneg %p65
        %p174 = pneg %p62
        %s175 = sadd.s32 %s34, %s35
        %s176 = smul.u32 16, %s175
        %p177 = scmp.lt.s32.totalorder %s176, 31
        %s178 = scalar_select %p177, %s176, 31
        %s179 = smul.addr %s178, 8
        %s180 = scalar_lea.vmem %s5, %s179
        %p181 = pneg %p93
        %p182 = pneg %p90
        %p183 = pneg %p119
        %p184 = pneg %p116
        %s185 = sand.u32 %s106, 1
        %s186 = scalar_lea.sflag [#allocation10], %s185
        %s187 = sand.u32 %s106, 1
        %s188 = smul.addr %s187, 8
        %s189 = scalar_lea.vmem [#allocation9], %s188
        %s190 = sadd.s32 %s34, %s35
        %s191 = smul.u32 16, %s190
        %p192 = scmp.lt.s32.totalorder %s191, 31
        %s193 = scalar_select %p192, %s191, 31
        %s194 = smul.addr %s193, 8
        %s195 = scalar_lea.vmem %s4, %s194
        %s196 = sadd.s32 %s34, %s35
        %s197 = smul.u32 16, %s196
        %s198 = sadd.s32 %s34, %s35
        %s199 = smul.u32 16, %s198
        %p200 = scmp.lt.s32.totalorder %s199, 31
        %s201 = scalar_select %p200, %s199, 31
        %s202 = smul.addr %s201, 8
        %s203 = scalar_lea.vmem %s5, %s202
        %s204 = sadd.s32 %s34, %s35
        %s205 = smul.u32 16, %s204
        %p206 = scmp.lt.s32.totalorder %s35, 0
        %s207 = ssub.s32 0, %s35
        %s208 = scalar_select %p206, %s207, %s35
        %s209 = sand.u32 %s208, 1
        %s210 = ssub.s32 0, %s209
        %s211 = scalar_select %p206, %s210, %s209
        %p212 = scmp.ne.s32.totalorder %s211, 0
        %p213 = scmp.lt.s32.totalorder %s211, 0
        %p214 = pnand %p213, %p212
        %p215 = pneg %p214
        %s216 = sadd.s32 %s211, 2
        %s217 = scalar_select %p215, %s216, %s211
        %s218 = sadd.s32 %s34, %s35
        %p219 = scmp.eq.s32.totalorder %s35, 0
        // Predicated region
        $region29: #{tpu_custom_call.1} parent=27 // pred_check
          %p220 = pneg %p219
        $region30: #{tpu_custom_call.1} parent=27 // pred_check_branch
          %222 = sbr.rel (%p220) target = $region32
        $region31: #{tpu_custom_call.1} parent=27 // pred_region
          %223 = vst [vmem:[%s189] sm:$0xff] 0.0
          %s224 = smul.u32 %s218, 128
          loop: start=0, step=1, limit=128
          $region33: #{tpu_custom_call.1} parent=31 // loop_pre_header
            _
          $region34: #{tpu_custom_call.1} parent=31 // loop_header
            %s226 = sphi 0, %s230
            %p227 = scmp.ge.s32.totalorder %s226, 128
          $region35: #{tpu_custom_call.1} parent=31 // loop_header_branch
            %229 = sbr.rel (%p227) target = $region39
          $region36: #{tpu_custom_call.1} parent=31 // loop_body
            %s231 = sadd.s32 %s224, %s226
            %s232 = sld [smem:[#allocation7 + %s231]]
            %s233 = sld [smem:[#allocation8 + %s231]]
            %s234 = scalar_lea.vmem %s2, %s232
            %s235 = smul.u32 %s217, 128
            %s236 = sadd.s32 %s226, %s235
            %s237 = scalar_lea.vmem [#allocation2], %s236
            %s238 = scalar_lea.sflag [#allocation4], %s217
            %p240 = scmp.lt.u32.totalorder 1, 8
            %p241 = pneg %p240
            // Predicated region
            $region40: #{tpu_custom_call.1} parent=36 // pred_check
              _
            $region41: #{tpu_custom_call.1} parent=36 // pred_check_branch
              %243 = sbr.rel (%p240) target = $region43
            $region42: #{tpu_custom_call.1} parent=36 // pred_region
              %s259 = sand.u32 1, 7
              %p260 = scmp.eq.s32.totalorder %s259, 0
              %p261 = pneg %p260
              // Predicated region
              $region55: #{tpu_custom_call.1} parent=42 // pred_check
                _
              $region56: #{tpu_custom_call.1} parent=42 // pred_check_branch
                %263 = sbr.rel (%p260) target = $region58
              $region57: #{tpu_custom_call.1} parent=42 // pred_region
                %s264 = sand.u32 1, 7
                %s265 = ssub.s32 1, %s264
                %s266 = scalar_lea.vmem %s234, %s265
                %s267 = ssub.s32 1, %s264
                %s268 = scalar_lea.vmem %s237, %s267 [#allocation2]
                %s269 = sshll.u32 1, %s264
                %s270 = ssub.s32 %s269, 1
                loop: start=0, step=1, limit=1
                $region59: #{tpu_custom_call.1} parent=57 // loop_pre_header
                  _
                $region60: #{tpu_custom_call.1} parent=57 // loop_header
                  %s272 = sphi 0, %s276
                  %p273 = scmp.ge.s32.totalorder %s272, 1
                  %s277 = sphi %s266, %s266
                  %s278 = sphi %s268, %s268
                $region61: #{tpu_custom_call.1} parent=57 // loop_header_branch
                  %275 = sbr.rel (%p273) target = $region65
                $region62: #{tpu_custom_call.1} parent=57 // loop_body
                  %v279 = vld [vmem:[%s277] sm:%s270]
                  %280 = vst [vmem:[%s278] sm:%s270] %v279
                $region63: #{tpu_custom_call.1} parent=57 // loop_footer
                  %s276 = sadd.s32 1, %s272
                $region64: #{tpu_custom_call.1} parent=57 // loop_footer_branch
                  %271 = sbr.rel target = $region60
                $region65: #{tpu_custom_call.1} parent=57 // loop_exit
                  _
              $region58: #{tpu_custom_call.1} parent=42 // pred_fallthru
                _
            $region43: #{tpu_custom_call.1} parent=36 // pred_fallthru
              _
            // Predicated region
            $region44: #{tpu_custom_call.1} parent=36 // pred_check
              %p244 = pneg %p240
            $region45: #{tpu_custom_call.1} parent=36 // pred_check_branch
              %246 = sbr.rel (%p244) target = $region47
            $region46: #{tpu_custom_call.1} parent=36 // pred_region
              %s247 = sshll.u32 1, 1
              %s248 = ssub.s32 %s247, 1
              loop: start=0, step=1, limit=1
              $region48: #{tpu_custom_call.1} parent=46 // loop_pre_header
                _
              $region49: #{tpu_custom_call.1} parent=46 // loop_header
                %s250 = sphi 0, %s254
                %p251 = scmp.ge.s32.totalorder %s250, 1
                %s255 = sphi %s234, %s234
                %s256 = sphi %s237, %s237
              $region50: #{tpu_custom_call.1} parent=46 // loop_header_branch
                %253 = sbr.rel (%p251) target = $region54
              $region51: #{tpu_custom_call.1} parent=46 // loop_body
                %v257 = vld [vmem:[%s255] sm:%s248]
                %258 = vst [vmem:[%s256] sm:%s248] %v257
              $region52: #{tpu_custom_call.1} parent=46 // loop_footer
                %s254 = sadd.s32 1, %s250
              $region53: #{tpu_custom_call.1} parent=46 // loop_footer_branch
                %249 = sbr.rel target = $region49
              $region54: #{tpu_custom_call.1} parent=46 // loop_exit
                _
            $region47: #{tpu_custom_call.1} parent=36 // pred_fallthru
              _
            // Predicated region
            $region66: #{tpu_custom_call.1} parent=36 // pred_check
              _
            $region67: #{tpu_custom_call.1} parent=36 // pred_check_branch
              %283 = sbr.rel (0) target = $region69
            $region68: #{tpu_custom_call.1} parent=36 // pred_region
              %284 = vsyncadd %s238, 16
            $region69: #{tpu_custom_call.1} parent=36 // pred_fallthru
              _
            %s285 = smul.addr %s233, 16
            %s286 = scalar_lea.hbm %s3, %s285
            %s287 = scalar_lea.vmem [#allocation3], %s236
            %s288 = scalar_lea.sflag [#allocation5], %s217
            // Predicated region
            $region70: #{tpu_custom_call.1} parent=36 // pred_check
              _
            $region71: #{tpu_custom_call.1} parent=36 // pred_check_branch
              %290 = sbr.rel target = $region73
            $region72: #{tpu_custom_call.1} parent=36 // pred_region
              %291 = sst [smem:[#allocation14]] [#allocation13]
              %292 = sst [smem:[#allocation15]] [#allocation12]
            $region73: #{tpu_custom_call.1} parent=36 // pred_fallthru
              _
            %294 = shalt.err (0)
            %s296 = sshll.u32 %s287, 4
            %s297 = int_to_ptr.vmem [resolvable:$true] %s296
            %299 = dma.hbm_to_vmem [thread:$0]  %s286, 16, %s297, %s288
          $region37: #{tpu_custom_call.1} parent=31 // loop_footer
            %s230 = sadd.s32 1, %s226
          $region38: #{tpu_custom_call.1} parent=31 // loop_footer_branch
            %225 = sbr.rel target = $region34
          $region39: #{tpu_custom_call.1} parent=31 // loop_exit
            _
        $region32: #{tpu_custom_call.1} parent=27 // pred_fallthru
          _
        loop: start=0, step=1, limit=128
        $region74: #{tpu_custom_call.1} parent=27 // loop_pre_header
          _
        $region75: #{tpu_custom_call.1} parent=27 // loop_header
          %s301 = sphi 0, %s305
          %p302 = scmp.ge.s32.totalorder %s301, 128
        $region76: #{tpu_custom_call.1} parent=27 // loop_header_branch
          %304 = sbr.rel (%p302) target = $region80
        $region77: #{tpu_custom_call.1} parent=27 // loop_body
          %s306 = scalar_lea.sflag [#allocation4], %s217
          %308 = dma.done %s306, 16
          %s309 = scalar_lea.sflag [#allocation5], %s217
          %311 = dma.done %s309, 16
        $region78: #{tpu_custom_call.1} parent=27 // loop_footer
          %s305 = sadd.s32 1, %s301
        $region79: #{tpu_custom_call.1} parent=27 // loop_footer_branch
          %300 = sbr.rel target = $region75
        $region80: #{tpu_custom_call.1} parent=27 // loop_exit
          _
        %s312 = sadd.s32 %s35, 1
        %p313 = scmp.lt.s32.totalorder %s312, 1
        // Predicated region
        $region81: #{tpu_custom_call.1} parent=27 // pred_check
          %p314 = pneg %p313
        $region82: #{tpu_custom_call.1} parent=27 // pred_check_branch
          %316 = sbr.rel (%p314) target = $region84
        $region83: #{tpu_custom_call.1} parent=27 // pred_region
          %s317 = sadd.s32 %s218, 1
          %s318 = ssub.s32 1, %s217
          %s319 = smul.u32 %s317, 128
          loop: start=0, step=1, limit=128
          $region85: #{tpu_custom_call.1} parent=83 // loop_pre_header
            _
          $region86: #{tpu_custom_call.1} parent=83 // loop_header
            %s321 = sphi 0, %s325
            %p322 = scmp.ge.s32.totalorder %s321, 128
          $region87: #{tpu_custom_call.1} parent=83 // loop_header_branch
            %324 = sbr.rel (%p322) target = $region91
          $region88: #{tpu_custom_call.1} parent=83 // loop_body
            %s326 = sadd.s32 %s319, %s321
            %s327 = sld [smem:[#allocation7 + %s326]]
            %s328 = sld [smem:[#allocation8 + %s326]]
            %s329 = scalar_lea.vmem %s2, %s327
            %s330 = smul.u32 %s318, 128
            %s331 = sadd.s32 %s321, %s330
            %s332 = scalar_lea.vmem [#allocation2], %s331
            %s333 = scalar_lea.sflag [#allocation4], %s318
            %p335 = scmp.lt.u32.totalorder 1, 8
            %p336 = pneg %p335
            // Predicated region
            $region92: #{tpu_custom_call.1} parent=88 // pred_check
              _
            $region93: #{tpu_custom_call.1} parent=88 // pred_check_branch
              %338 = sbr.rel (%p335) target = $region95
            $region94: #{tpu_custom_call.1} parent=88 // pred_region
              %s354 = sand.u32 1, 7
              %p355 = scmp.eq.s32.totalorder %s354, 0
              %p356 = pneg %p355
              // Predicated region
              $region107: #{tpu_custom_call.1} parent=94 // pred_check
                _
              $region108: #{tpu_custom_call.1} parent=94 // pred_check_branch
                %358 = sbr.rel (%p355) target = $region110
              $region109: #{tpu_custom_call.1} parent=94 // pred_region
                %s359 = sand.u32 1, 7
                %s360 = ssub.s32 1, %s359
                %s361 = scalar_lea.vmem %s329, %s360
                %s362 = ssub.s32 1, %s359
                %s363 = scalar_lea.vmem %s332, %s362 [#allocation2]
                %s364 = sshll.u32 1, %s359
                %s365 = ssub.s32 %s364, 1
                loop: start=0, step=1, limit=1
                $region111: #{tpu_custom_call.1} parent=109 // loop_pre_header
                  _
                $region112: #{tpu_custom_call.1} parent=109 // loop_header
                  %s367 = sphi 0, %s371
                  %p368 = scmp.ge.s32.totalorder %s367, 1
                  %s372 = sphi %s361, %s361
                  %s373 = sphi %s363, %s363
                $region113: #{tpu_custom_call.1} parent=109 // loop_header_branch
                  %370 = sbr.rel (%p368) target = $region117
                $region114: #{tpu_custom_call.1} parent=109 // loop_body
                  %v374 = vld [vmem:[%s372] sm:%s365]
                  %375 = vst [vmem:[%s373] sm:%s365] %v374
                $region115: #{tpu_custom_call.1} parent=109 // loop_footer
                  %s371 = sadd.s32 1, %s367
                $region116: #{tpu_custom_call.1} parent=109 // loop_footer_branch
                  %366 = sbr.rel target = $region112
                $region117: #{tpu_custom_call.1} parent=109 // loop_exit
                  _
              $region110: #{tpu_custom_call.1} parent=94 // pred_fallthru
                _
            $region95: #{tpu_custom_call.1} parent=88 // pred_fallthru
              _
            // Predicated region
            $region96: #{tpu_custom_call.1} parent=88 // pred_check
              %p339 = pneg %p335
            $region97: #{tpu_custom_call.1} parent=88 // pred_check_branch
              %341 = sbr.rel (%p339) target = $region99
            $region98: #{tpu_custom_call.1} parent=88 // pred_region
              %s342 = sshll.u32 1, 1
              %s343 = ssub.s32 %s342, 1
              loop: start=0, step=1, limit=1
              $region100: #{tpu_custom_call.1} parent=98 // loop_pre_header
                _
              $region101: #{tpu_custom_call.1} parent=98 // loop_header
                %s345 = sphi 0, %s349
                %p346 = scmp.ge.s32.totalorder %s345, 1
                %s350 = sphi %s329, %s329
                %s351 = sphi %s332, %s332
              $region102: #{tpu_custom_call.1} parent=98 // loop_header_branch
                %348 = sbr.rel (%p346) target = $region106
              $region103: #{tpu_custom_call.1} parent=98 // loop_body
                %v352 = vld [vmem:[%s350] sm:%s343]
                %353 = vst [vmem:[%s351] sm:%s343] %v352
              $region104: #{tpu_custom_call.1} parent=98 // loop_footer
                %s349 = sadd.s32 1, %s345
              $region105: #{tpu_custom_call.1} parent=98 // loop_footer_branch
                %344 = sbr.rel target = $region101
              $region106: #{tpu_custom_call.1} parent=98 // loop_exit
                _
            $region99: #{tpu_custom_call.1} parent=88 // pred_fallthru
              _
            // Predicated region
            $region118: #{tpu_custom_call.1} parent=88 // pred_check
              _
            $region119: #{tpu_custom_call.1} parent=88 // pred_check_branch
              %378 = sbr.rel (0) target = $region121
            $region120: #{tpu_custom_call.1} parent=88 // pred_region
              %379 = vsyncadd %s333, 16
            $region121: #{tpu_custom_call.1} parent=88 // pred_fallthru
              _
            %s380 = smul.addr %s328, 16
            %s381 = scalar_lea.hbm %s3, %s380
            %s382 = scalar_lea.vmem [#allocation3], %s331
            %s383 = scalar_lea.sflag [#allocation5], %s318
            // Predicated region
            $region122: #{tpu_custom_call.1} parent=88 // pred_check
              _
            $region123: #{tpu_custom_call.1} parent=88 // pred_check_branch
              %385 = sbr.rel target = $region125
            $region124: #{tpu_custom_call.1} parent=88 // pred_region
              %386 = sst [smem:[#allocation14]] [#allocation18]
              %387 = sst [smem:[#allocation15]] [#allocation17]
            $region125: #{tpu_custom_call.1} parent=88 // pred_fallthru
              _
            %389 = shalt.err (0)
            %s391 = sshll.u32 %s382, 4
            %s392 = int_to_ptr.vmem [resolvable:$true] %s391
            %394 = dma.hbm_to_vmem [thread:$0]  %s381, 16, %s392, %s383
          $region89: #{tpu_custom_call.1} parent=83 // loop_footer
            %s325 = sadd.s32 1, %s321
          $region90: #{tpu_custom_call.1} parent=83 // loop_footer_branch
            %320 = sbr.rel target = $region86
          $region91: #{tpu_custom_call.1} parent=83 // loop_exit
            _
        $region84: #{tpu_custom_call.1} parent=27 // pred_fallthru
          _
        %s395 = smul.u32 %s217, 128
        %s396 = scalar_lea.vmem [#allocation2], %s395
        %v397 = vld [vmem:[%s396] sm:$0xff]
        %v398 = vld [vmem:[%s396 + $0x8] sm:$0xff]
        %v399 = vld [vmem:[%s396 + $0x10] sm:$0xff]
        %v400 = vld [vmem:[%s396 + $0x18] sm:$0xff]
        %v401 = vld [vmem:[%s396 + $0x20] sm:$0xff]
        %v402 = vld [vmem:[%s396 + $0x28] sm:$0xff]
        %v403 = vld [vmem:[%s396 + $0x30] sm:$0xff]
        %v404 = vld [vmem:[%s396 + $0x38] sm:$0xff]
        %v405 = vld [vmem:[%s396 + $0x40] sm:$0xff]
        %v406 = vld [vmem:[%s396 + $0x48] sm:$0xff]
        %v407 = vld [vmem:[%s396 + $0x50] sm:$0xff]
        %v408 = vld [vmem:[%s396 + $0x58] sm:$0xff]
        %v409 = vld [vmem:[%s396 + $0x60] sm:$0xff]
        %v410 = vld [vmem:[%s396 + $0x68] sm:$0xff]
        %v411 = vld [vmem:[%s396 + $0x70] sm:$0xff]
        %v412 = vld [vmem:[%s396 + $0x78] sm:$0xff]
        %s413 = scalar_lea.vmem [#allocation3], %s395
        %v414 = vld [vmem:[%s413] sm:$0xff]
        %v415 = vld [vmem:[%s413 + $0x8] sm:$0xff]
        %v416 = vld [vmem:[%s413 + $0x10] sm:$0xff]
        %v417 = vld [vmem:[%s413 + $0x18] sm:$0xff]
        %v418 = vld [vmem:[%s413 + $0x20] sm:$0xff]
        %v419 = vld [vmem:[%s413 + $0x28] sm:$0xff]
        %v420 = vld [vmem:[%s413 + $0x30] sm:$0xff]
        %v421 = vld [vmem:[%s413 + $0x38] sm:$0xff]
        %v422 = vld [vmem:[%s413 + $0x40] sm:$0xff]
        %v423 = vld [vmem:[%s413 + $0x48] sm:$0xff]
        %v424 = vld [vmem:[%s413 + $0x50] sm:$0xff]
        %v425 = vld [vmem:[%s413 + $0x58] sm:$0xff]
        %v426 = vld [vmem:[%s413 + $0x60] sm:$0xff]
        %v427 = vld [vmem:[%s413 + $0x68] sm:$0xff]
        %v428 = vld [vmem:[%s413 + $0x70] sm:$0xff]
        %v429 = vld [vmem:[%s413 + $0x78] sm:$0xff]
        %v430 = vmul.f32 %v397, %v414
        %v431 = vmul.f32 %v398, %v415
        %v432 = vmul.f32 %v399, %v416
        %v433 = vmul.f32 %v400, %v417
        %v434 = vmul.f32 %v401, %v418
        %v435 = vmul.f32 %v402, %v419
        %v436 = vmul.f32 %v403, %v420
        %v437 = vmul.f32 %v404, %v421
        %v438 = vmul.f32 %v405, %v422
        %v439 = vmul.f32 %v406, %v423
        %v440 = vmul.f32 %v407, %v424
        %v441 = vmul.f32 %v408, %v425
        %v442 = vmul.f32 %v409, %v426
        %v443 = vmul.f32 %v410, %v427
        %v444 = vmul.f32 %v411, %v428
        %v445 = vmul.f32 %v412, %v429
        %446 = vadd.xlane.f32.xlu0 %v430
        %v447 = vpop.xlane.xlu0 %446
        %448 = vadd.xlane.f32.xlu0 %v431
        %v449 = vpop.xlane.xlu0 %448
        %450 = vadd.xlane.f32.xlu0 %v432
        %v451 = vpop.xlane.xlu0 %450
        %452 = vadd.xlane.f32.xlu0 %v433
        %v453 = vpop.xlane.xlu0 %452
        %454 = vadd.xlane.f32.xlu0 %v434
        %v455 = vpop.xlane.xlu0 %454
        %456 = vadd.xlane.f32.xlu0 %v435
        %v457 = vpop.xlane.xlu0 %456
        %458 = vadd.xlane.f32.xlu0 %v436
        %v459 = vpop.xlane.xlu0 %458
        %460 = vadd.xlane.f32.xlu0 %v437
        %v461 = vpop.xlane.xlu0 %460
        %462 = vadd.xlane.f32.xlu0 %v438
        %v463 = vpop.xlane.xlu0 %462
        %464 = vadd.xlane.f32.xlu0 %v439
        %v465 = vpop.xlane.xlu0 %464
        %466 = vadd.xlane.f32.xlu0 %v440
        %v467 = vpop.xlane.xlu0 %466
        %468 = vadd.xlane.f32.xlu0 %v441
        %v469 = vpop.xlane.xlu0 %468
        %470 = vadd.xlane.f32.xlu0 %v442
        %v471 = vpop.xlane.xlu0 %470
        %472 = vadd.xlane.f32.xlu0 %v443
        %v473 = vpop.xlane.xlu0 %472
        %474 = vadd.xlane.f32.xlu0 %v444
        %v475 = vpop.xlane.xlu0 %474
        %476 = vadd.xlane.f32.xlu0 %v445
        %v477 = vpop.xlane.xlu0 %476
        %v478 = vld [vmem:[%s195] sm:$0xff]
        %v479 = vld [vmem:[%s195 + $0x8] sm:$0xff]
        %v480 = vld [vmem:[%s195 + $0x10] sm:$0xff]
        %v481 = vld [vmem:[%s195 + $0x18] sm:$0xff]
        %v482 = vld [vmem:[%s195 + $0x20] sm:$0xff]
        %v483 = vld [vmem:[%s195 + $0x28] sm:$0xff]
        %v484 = vld [vmem:[%s195 + $0x30] sm:$0xff]
        %v485 = vld [vmem:[%s195 + $0x38] sm:$0xff]
        %v486 = vld [vmem:[%s195 + $0x40] sm:$0xff]
        %v487 = vld [vmem:[%s195 + $0x48] sm:$0xff]
        %v488 = vld [vmem:[%s195 + $0x50] sm:$0xff]
        %v489 = vld [vmem:[%s195 + $0x58] sm:$0xff]
        %v490 = vld [vmem:[%s195 + $0x60] sm:$0xff]
        %v491 = vld [vmem:[%s195 + $0x68] sm:$0xff]
        %v492 = vld [vmem:[%s195 + $0x70] sm:$0xff]
        %v493 = vld [vmem:[%s195 + $0x78] sm:$0xff]
        %v494 = vsub.f32 %v447, %v478
        %v495 = vsub.f32 %v449, %v479
        %v496 = vsub.f32 %v451, %v480
        %v497 = vsub.f32 %v453, %v481
        %v498 = vsub.f32 %v455, %v482
        %v499 = vsub.f32 %v457, %v483
        %v500 = vsub.f32 %v459, %v484
        %v501 = vsub.f32 %v461, %v485
        %v502 = vsub.f32 %v463, %v486
        %v503 = vsub.f32 %v465, %v487
        %v504 = vsub.f32 %v467, %v488
        %v505 = vsub.f32 %v469, %v489
        %v506 = vsub.f32 %v471, %v490
        %v507 = vsub.f32 %v473, %v491
        %v508 = vsub.f32 %v475, %v492
        %v509 = vsub.f32 %v477, %v493
        %v510 = vld [vmem:[%s203] sm:$0xff]
        %v511 = vld [vmem:[%s203 + $0x8] sm:$0xff]
        %v512 = vld [vmem:[%s203 + $0x10] sm:$0xff]
        %v513 = vld [vmem:[%s203 + $0x18] sm:$0xff]
        %v514 = vld [vmem:[%s203 + $0x20] sm:$0xff]
        %v515 = vld [vmem:[%s203 + $0x28] sm:$0xff]
        %v516 = vld [vmem:[%s203 + $0x30] sm:$0xff]
        %v517 = vld [vmem:[%s203 + $0x38] sm:$0xff]
        %v518 = vld [vmem:[%s203 + $0x40] sm:$0xff]
        %v519 = vld [vmem:[%s203 + $0x48] sm:$0xff]
        %v520 = vld [vmem:[%s203 + $0x50] sm:$0xff]
        %v521 = vld [vmem:[%s203 + $0x58] sm:$0xff]
        %v522 = vld [vmem:[%s203 + $0x60] sm:$0xff]
        %v523 = vld [vmem:[%s203 + $0x68] sm:$0xff]
        %v524 = vld [vmem:[%s203 + $0x70] sm:$0xff]
        %v525 = vld [vmem:[%s203 + $0x78] sm:$0xff]
        %v526 = vmul.f32 %v510, %v494
        %v527 = vmul.f32 %v511, %v495
        %v528 = vmul.f32 %v512, %v496
        %v529 = vmul.f32 %v513, %v497
        %v530 = vmul.f32 %v514, %v498
        %v531 = vmul.f32 %v515, %v499
        %v532 = vmul.f32 %v516, %v500
        %v533 = vmul.f32 %v517, %v501
        %v534 = vmul.f32 %v518, %v502
        %v535 = vmul.f32 %v519, %v503
        %v536 = vmul.f32 %v520, %v504
        %v537 = vmul.f32 %v521, %v505
        %v538 = vmul.f32 %v522, %v506
        %v539 = vmul.f32 %v523, %v507
        %v540 = vmul.f32 %v524, %v508
        %v541 = vmul.f32 %v525, %v509
        %v542 = vmul.f32 %v526, %v494
        %v543 = vmul.f32 %v527, %v495
        %v544 = vmul.f32 %v528, %v496
        %v545 = vmul.f32 %v529, %v497
        %v546 = vmul.f32 %v530, %v498
        %v547 = vmul.f32 %v531, %v499
        %v548 = vmul.f32 %v532, %v500
        %v549 = vmul.f32 %v533, %v501
        %v550 = vmul.f32 %v534, %v502
        %v551 = vmul.f32 %v535, %v503
        %v552 = vmul.f32 %v536, %v504
        %v553 = vmul.f32 %v537, %v505
        %v554 = vmul.f32 %v538, %v506
        %v555 = vmul.f32 %v539, %v507
        %v556 = vmul.f32 %v540, %v508
        %v557 = vmul.f32 %v541, %v509
        %vm558 = vcmask 7168
        %v559 = vsel %vm558, %v542, 0.0
        %v560 = vsel %vm558, %v543, 0.0
        %v561 = vadd.f32 %v559, %v560
        %v562 = vsel %vm558, %v544, 0.0
        %v563 = vadd.f32 %v561, %v562
        %v564 = vsel %vm558, %v545, 0.0
        %v565 = vadd.f32 %v563, %v564
        %v566 = vsel %vm558, %v546, 0.0
        %v567 = vadd.f32 %v565, %v566
        %v568 = vsel %vm558, %v547, 0.0
        %v569 = vadd.f32 %v567, %v568
        %v570 = vsel %vm558, %v548, 0.0
        %v571 = vadd.f32 %v569, %v570
        %v572 = vsel %vm558, %v549, 0.0
        %v573 = vadd.f32 %v571, %v572
        %v574 = vsel %vm558, %v550, 0.0
        %v575 = vadd.f32 %v573, %v574
        %v576 = vsel %vm558, %v551, 0.0
        %v577 = vadd.f32 %v575, %v576
        %v578 = vsel %vm558, %v552, 0.0
        %v579 = vadd.f32 %v577, %v578
        %v580 = vsel %vm558, %v553, 0.0
        %v581 = vadd.f32 %v579, %v580
        %v582 = vsel %vm558, %v554, 0.0
        %v583 = vadd.f32 %v581, %v582
        %v584 = vsel %vm558, %v555, 0.0
        %v585 = vadd.f32 %v583, %v584
        %v586 = vsel %vm558, %v556, 0.0
        %v587 = vadd.f32 %v585, %v586
        %v588 = vsel %vm558, %v557, 0.0
        %v589 = vadd.f32 %v587, %v588
        %590 = vadd.xlane.f32.xlu0 %v589
        %v591 = vpop.xlane.xlu0 %590
        %v592 = vrot.slane %v591, 4
        %v593 = vadd.f32 %v591, %v592
        %v594 = vrot.slane %v593, 2
        %v595 = vadd.f32 %v593, %v594
        %v596 = vrot.slane %v595, 1
        %v597 = vadd.f32 %v595, %v596
        %s598 = vtos %v597
        %v599 = vld [vmem:[%s189] sm:$0xff]
        %v600 = vstv %s598
        %v601 = vadd.f32 %v599, %v600
        %602 = vst [vmem:[%s189] sm:$0xff] %v601
        %s603 = sand.u32 %s106, 1
        %s604 = scalar_lea.sflag [#allocation10], %s603
        %s605 = sand.u32 %s106, 1
        %s606 = smul.addr %s605, 8
        %s607 = scalar_lea.vmem [#allocation9], %s606
        // Predicated region
        $region126: #{tpu_custom_call.1} parent=27 // pred_check
          %p608 = pneg %p116
        $region127: #{tpu_custom_call.1} parent=27 // pred_check_branch
          %610 = sbr.rel (%p608) target = $region129
        $region128: #{tpu_custom_call.1} parent=27 // pred_region
          %s612 = ssub.s32 128, 128
          %613 = vsyncadd %s604, %s612
          %s614 = smul.addr %s34, 128
          %s615 = scalar_lea.hbm %s6, %s614
          %s617 = sshll.u32 %s607, 4
          %s618 = int_to_ptr.vmem [resolvable:$true] %s617
          %620 = dma.vmem_to_hbm [thread:$0]  %s618, 128, %s615, %s604
        $region129: #{tpu_custom_call.1} parent=27 // pred_fallthru
          _
      $region28: #{tpu_custom_call.1} parent=5 // pred_fallthru
        _
      %p621 = scmp.le.s32.totalorder 2, %s25
      // Predicated region
      $region130: #{tpu_custom_call.1} parent=5 // pred_check
        %p622 = pneg %p621
      $region131: #{tpu_custom_call.1} parent=5 // pred_check_branch
        %624 = sbr.rel (%p622) target = $region133
      $region132: #{tpu_custom_call.1} parent=5 // pred_region
        %s625 = ssub.s32 %s25, 2
        // Predicated region
        $region134: #{tpu_custom_call.1} parent=132 // pred_check
          %p626 = pneg %p122
        $region135: #{tpu_custom_call.1} parent=132 // pred_check_branch
          %628 = sbr.rel (%p626) target = $region137
        $region136: #{tpu_custom_call.1} parent=132 // pred_region
          %s629 = sand.u32 %s107, 1
          %s630 = scalar_lea.sflag [#allocation10], %s629
          %s631 = sand.u32 %s107, 1
          %s632 = smul.addr %s631, 8
          %s633 = scalar_lea.vmem [#allocation9], %s632
          %634 = dma.done %s630, 128
        $region137: #{tpu_custom_call.1} parent=132 // pred_fallthru
          _
      $region133: #{tpu_custom_call.1} parent=5 // pred_fallthru
        _
    $region6: #{tpu_custom_call.1} parent=1 // loop_footer
      %s29 = sadd.s32 1, %s25
    $region7: #{tpu_custom_call.1} parent=1 // loop_footer_branch
      %24 = sbr.rel target = $region3
    $region8: #{tpu_custom_call.1} parent=1 // loop_exit
      _
    %635 = vsyncpa [#allocation10], 1
    %s636 = scalar_lea.sflag [#allocation10], 1
    %637 = vsyncpa %s636, 1
  %638 = vsyncmov [#allocation4]
  %s639 = vpop.sfrf %638
  %p640 = scmp.eq.s32.totalorder %s639, 0
  %p641 = pneg %p640
  %643 = shalt.err (%p641)
  %s644 = scalar_lea.sflag [#allocation4], 1
  %645 = vsyncmov %s644
  %s646 = vpop.sfrf %645
  %p647 = scmp.eq.s32.totalorder %s646, 0
  %p648 = pneg %p647
  %650 = shalt.err (%p648)
  %651 = vsyncmov [#allocation5]
  %s652 = vpop.sfrf %651
  %p653 = scmp.eq.s32.totalorder %s652, 0
  %p654 = pneg %p653
  %656 = shalt.err (%p654)
  %s657 = scalar_lea.sflag [#allocation5], 1
  %658 = vsyncmov %s657
  %s659 = vpop.sfrf %658
  %p660 = scmp.eq.s32.totalorder %s659, 0
  %p661 = pneg %p660
  %663 = shalt.err (%p661)

</llo_original>
